<compile_context>
chip_gen: v6e
topology: v6e:2x2x1
jax: 0.10.0
libtpu: 0.0.40
codegen_flags: <defaults>
</compile_context>

<pallas_src>
import functools

import jax
import jax.numpy as jnp
from jax.experimental import pallas as pl
from jax.experimental.pallas import tpu as pltpu

SMOOTH = 1e-06
LANES = 128


def _tversky_partial_kernel(pred_ref, true_ref, out_ref, *, n_valid, block_rows,
                            masked):
    """One grid step: per-lane partial sums of [p*t, p, t] for this tile."""
    x = pred_ref[...].astype(jnp.float32)
    t = true_ref[...].astype(jnp.float32)

    # sigmoid via tanh: single EUP push (vs exp + reciprocal).
    p = 0.5 * (1.0 + jnp.tanh(0.5 * x))

    if masked:
        # Zero out elements past the true flattened length (covers both the
        # <128 lane tail and the rows of a partial last grid block, whose
        # contents Pallas leaves unspecified).  jnp.where (not multiply) so
        # that NaN/Inf garbage in the out-of-bounds region is dropped.
        start = pl.program_id(0) * (block_rows * LANES)
        row = jax.lax.broadcasted_iota(jnp.int32, p.shape, 0)
        lane = jax.lax.broadcasted_iota(jnp.int32, p.shape, 1)
        valid = (start + row * LANES + lane) < n_valid
        p = jnp.where(valid, p, 0.0)
        t = jnp.where(valid, t, 0.0)

    pt = p * t
    # Sublane-direction reductions: mostly VPU vreg adds + a tiny final
    # 8->1 XLU reduce per quantity.  No cross-lane reduce in the hot loop.
    out_ref[0:1, :] = jnp.sum(pt, axis=0, keepdims=True)
    out_ref[1:2, :] = jnp.sum(p, axis=0, keepdims=True)
    out_ref[2:3, :] = jnp.sum(t, axis=0, keepdims=True)


def tversky_loss(pred_mask, true_mask, alpha=0.5, beta=0.5, *, tm=4096):
    """Matches TverskyLoss.forward: 1 - (TP+s)/(TP + a*FP + b*FN + s)."""
    assert tm > 0 and tm % 8 == 0, "tm must be a positive multiple of 8"

    pred = jnp.ravel(pred_mask)   # .view(-1); native dtype, cast in-kernel
    true = jnp.ravel(true_mask)
    n = pred.shape[0]

    # Pad at most 127 elements so reshape to (rows, 128) is layout-free.
    # (Only hit for ragged sizes; divisible-by-128 inputs need no copy.)
    rem = n % LANES
    if rem:
        pad = LANES - rem
        pred = jnp.pad(pred, (0, pad))
        true = jnp.pad(true, (0, pad))
    rows = pred.shape[0] // LANES
    pred2d = pred.reshape(rows, LANES)
    true2d = true.reshape(rows, LANES)

    # Block rows: full extent for small inputs, else the (multiple-of-8) tm.
    tm_eff = rows if rows <= tm else tm
    num_blocks = pl.cdiv(rows, tm_eff)
    # Mask only needed if the grid over-covers the true element count.
    masked = (num_blocks * tm_eff * LANES) != n

    kernel = functools.partial(
        _tversky_partial_kernel,
        n_valid=n,
        block_rows=tm_eff,
        masked=masked,
    )

    partials = pl.pallas_call(
        kernel,
        out_shape=jax.ShapeDtypeStruct((num_blocks, 3, LANES), jnp.float32),
        grid=(num_blocks,),
        in_specs=[
            pl.BlockSpec((tm_eff, LANES), lambda i: (i, 0)),
            pl.BlockSpec((tm_eff, LANES), lambda i: (i, 0)),
        ],
        out_specs=pl.BlockSpec((None, 3, LANES), lambda i: (i, 0, 0)),
        compiler_params=pltpu.CompilerParams(
            dimension_semantics=("parallel",),
        ),
    )(pred2d, true2d)

    # Tiny final combine in plain JAX.
    sums = jnp.sum(partials, axis=(0, 2))          # [sum(p*t), sum(p), sum(t)]
    TP = sums[0]
    FP = sums[1] - TP                               # sum((1-t)*p)
    FN = sums[2] - TP                               # sum(t*(1-p))
    tversky = (TP + SMOOTH) / (TP + alpha * FP + beta * FN + SMOOTH)
    return 1.0 - tversky


def tversky_loss_ref(pred_mask, true_mask, alpha=0.5, beta=0.5):
    p = jax.nn.sigmoid(jnp.ravel(pred_mask).astype(jnp.float32))
    t = jnp.ravel(true_mask).astype(jnp.float32)
    TP = jnp.sum(p * t)
    FP = jnp.sum((1.0 - t) * p)
    FN = jnp.sum(t * (1.0 - p))
    tversky = (TP + SMOOTH) / (TP + alpha * FP + beta * FN + SMOOTH)
    return 1.0 - tversky


if __name__ == "__main__":
    key = jax.random.PRNGKey(0)
    k1, k2 = jax.random.split(key)
    # NCHW-shaped logits and a binary mask, like a segmentation loss input.
    pred = jax.random.normal(k1, (2, 4, 16, 16), dtype=jnp.float32)
    true = (jax.random.uniform(k2, (2, 4, 16, 16)) > 0.5).astype(jnp.float32)

    loss = jax.block_until_ready(tversky_loss(pred, true, alpha=0.5, beta=0.5))
    ref = jax.block_until_ready(tversky_loss_ref(pred, true, alpha=0.5, beta=0.5))
    assert jnp.allclose(loss, ref, atol=1e-5, rtol=1e-5), (loss, ref)

    # Also exercise a ragged size (tail masking path) at a small shape.
    k3, k4 = jax.random.split(k1)
    pred_r = jax.random.normal(k3, (3, 5, 7, 11), dtype=jnp.float32)   # 1155 elems
    true_r = (jax.random.uniform(k4, (3, 5, 7, 11)) > 0.5).astype(jnp.float32)
    loss_r = jax.block_until_ready(tversky_loss(pred_r, true_r, alpha=0.3, beta=0.7))
    ref_r = jax.block_until_ready(tversky_loss_ref(pred_r, true_r, alpha=0.3, beta=0.7))
    assert jnp.allclose(loss_r, ref_r, atol=1e-5, rtol=1e-5), (loss_r, ref_r)

    # Exercise the multi-block path (rows > tm) with a tiny tm override, plus
    # bf16 logits to check in-kernel casting.
    k5, k6 = jax.random.split(k2)
    pred_b = jax.random.normal(k5, (4, 8, 32, 32), dtype=jnp.bfloat16)
    true_b = (jax.random.uniform(k6, (4, 8, 32, 32)) > 0.5).astype(jnp.float32)
    loss_b = jax.block_until_ready(tversky_loss(pred_b, true_b, tm=64))
    ref_b = jax.block_until_ready(tversky_loss_ref(pred_b, true_b))
    assert jnp.allclose(loss_b, ref_b, atol=2e-3, rtol=2e-3), (loss_b, ref_b)

    print("KERNEL_OK")
</pallas_src>

<mosaic_0001>
module attributes {stable_mosaic.version = 11 : i64} {
  func.func @_tversky_partial_kernel(%arg0: i32, %arg1: memref<16x128xf32, #tpu.memory_space<vmem>>, %arg2: memref<16x128xf32, #tpu.memory_space<vmem>>, %arg3: memref<1x3x128xf32, #tpu.memory_space<vmem>>) attributes {dimension_semantics = [#tpu.dimension_semantics<parallel>], iteration_bounds = array<i64: 1>, scalar_prefetch = 0 : i64, scratch_operands = 0 : i64, tpu.core_type = #tpu.core_type<tc>, window_params = [{transform_indices = @transform_0, window_bounds = array<i64: 16, 128>}, {transform_indices = @transform_1, window_bounds = array<i64: 16, 128>}, {transform_indices = @transform_2, window_bounds = array<i64: 1, 3, 128>}]} {
    %c0 = arith.constant 0 : index
    %c0_0 = arith.constant 0 : index
    %0 = vector.load %arg1[%c0, %c0_0] : memref<16x128xf32, #tpu.memory_space<vmem>>, vector<16x128xf32>
    %c0_1 = arith.constant 0 : index
    %c0_2 = arith.constant 0 : index
    %1 = vector.load %arg2[%c0_1, %c0_2] : memref<16x128xf32, #tpu.memory_space<vmem>>, vector<16x128xf32>
    %cst = arith.constant 5.000000e-01 : f32
    %2 = vector.broadcast %cst : f32 to vector<16x128xf32>
    %3 = arith.mulf %2, %0 : vector<16x128xf32>
    %4 = math.tanh %3 : vector<16x128xf32>
    %cst_3 = arith.constant 1.000000e+00 : f32
    %5 = vector.broadcast %cst_3 : f32 to vector<16x128xf32>
    %6 = arith.addf %5, %4 : vector<16x128xf32>
    %cst_4 = arith.constant 5.000000e-01 : f32
    %7 = vector.broadcast %cst_4 : f32 to vector<16x128xf32>
    %8 = arith.mulf %7, %6 : vector<16x128xf32>
    %9 = arith.mulf %8, %1 : vector<16x128xf32>
    %cst_5 = arith.constant dense<0.000000e+00> : vector<128xf32>
    %10 = vector.multi_reduction <add>, %9, %cst_5 [0] : vector<16x128xf32> to vector<128xf32>
    %11 = vector.shape_cast %10 : vector<128xf32> to vector<1x128xf32>
    %c0_6 = arith.constant 0 : index
    %c0_7 = arith.constant 0 : index
    %c0_8 = arith.constant 0 : index
    %12 = vector.load %arg3[%c0_6, %c0_7, %c0_8] : memref<1x3x128xf32, #tpu.memory_space<vmem>>, vector<1x1x128xf32>
    %13 = vector.shape_cast %12 : vector<1x1x128xf32> to vector<1x128xf32>
    %14 = vector.shape_cast %11 : vector<1x128xf32> to vector<1x1x128xf32>
    tpu.vector_store %arg3[%c0_6, %c0_7, %c0_8], %14 {strides = array<i32>} : memref<1x3x128xf32, #tpu.memory_space<vmem>>, vector<1x1x128xf32>,
    %cst_9 = arith.constant dense<0.000000e+00> : vector<128xf32>
    %15 = vector.multi_reduction <add>, %8, %cst_9 [0] : vector<16x128xf32> to vector<128xf32>
    %16 = vector.shape_cast %15 : vector<128xf32> to vector<1x128xf32>
    %c0_10 = arith.constant 0 : index
    %c1 = arith.constant 1 : index
    %c0_11 = arith.constant 0 : index
    %17 = vector.load %arg3[%c0_10, %c1, %c0_11] : memref<1x3x128xf32, #tpu.memory_space<vmem>>, vector<1x1x128xf32>
    %18 = vector.shape_cast %17 : vector<1x1x128xf32> to vector<1x128xf32>
    %19 = vector.shape_cast %16 : vector<1x128xf32> to vector<1x1x128xf32>
    tpu.vector_store %arg3[%c0_10, %c1, %c0_11], %19 {strides = array<i32>} : memref<1x3x128xf32, #tpu.memory_space<vmem>>, vector<1x1x128xf32>,
    %cst_12 = arith.constant dense<0.000000e+00> : vector<128xf32>
    %20 = vector.multi_reduction <add>, %1, %cst_12 [0] : vector<16x128xf32> to vector<128xf32>
    %21 = vector.shape_cast %20 : vector<128xf32> to vector<1x128xf32>
    %c0_13 = arith.constant 0 : index
    %c2 = arith.constant 2 : index
    %c0_14 = arith.constant 0 : index
    %22 = vector.load %arg3[%c0_13, %c2, %c0_14] : memref<1x3x128xf32, #tpu.memory_space<vmem>>, vector<1x1x128xf32>
    %23 = vector.shape_cast %22 : vector<1x1x128xf32> to vector<1x128xf32>
    %24 = vector.shape_cast %21 : vector<1x128xf32> to vector<1x1x128xf32>
    tpu.vector_store %arg3[%c0_13, %c2, %c0_14], %24 {strides = array<i32>} : memref<1x3x128xf32, #tpu.memory_space<vmem>>, vector<1x1x128xf32>,
    return
  }
  func.func @transform_0(%arg0: i32) -> (i32, i32) {
    %c0_i32 = arith.constant 0 : i32
    %c0_i32_0 = arith.constant 0 : i32
    return %arg0, %c0_i32 : i32, i32
  }
  func.func @transform_1(%arg0: i32) -> (i32, i32) {
    %c0_i32 = arith.constant 0 : i32
    %c0_i32_0 = arith.constant 0 : i32
    return %arg0, %c0_i32 : i32, i32
  }
  func.func @transform_2(%arg0: i32) -> (i32, i32, i32) {
    %c0_i32 = arith.constant 0 : i32
    %c0_i32_0 = arith.constant 0 : i32
    %c0_i32_1 = arith.constant 0 : i32
    return %arg0, %c0_i32, %c0_i32_0 : i32, i32, i32
  }
}

</mosaic_0001>

<llo_original>
// kernel: tpu_custom_call.1
$region0: #{tpu_custom_call.1}
  #allocation0 [shape = 'u32[]', space=smem, size = 0x4, offset = 0x4, fixed_abs, tag = 'smem constant byte address 0x4 - core index']
  #allocation1 [shape = 'u32[144,128]{1,0:T(1,128)}', space=vmem, size = 0x12000, scoped, tag = 'internal scratch']
  %s0 = inlined_call_operand.hbm [shape: f32[16,128], index: 0, kind: input, shape index: {}]
  %s1 = inlined_call_operand.hbm [shape: f32[16,128], index: 1, kind: input, shape index: {}]
  %s2 = inlined_call_operand.vmem [shape: f32[1,3,128], index: 2, kind: output, shape index: {}]
  %s3 = sld [smem:[#allocation0]]
  $region26: #{tpu_custom_call.1} parent=0
    _
  %s5 = ssub.s32 1, %s3
  %s6 = scalar_select 0, %s5, %s3
  $region1: #{tpu_custom_call.1} parent=0
    #allocation2 [shape = 'u8[8192]{0}', space=vmem, size = 0x2000, scoped, tag = 'input window, operand 0, single buffered']
    #allocation3 [shape = 's32[1]{0}', space=sflag, size = 0x4, scoped, tag = 'scoped memory for tpu_custom_call.1']
    #allocation4 [shape = 'u8[8192]{0}', space=vmem, size = 0x2000, scoped, tag = 'input window, operand 1, single buffered']
    #allocation5 [shape = 's32[1]{0}', space=sflag, size = 0x4, scoped, tag = 'scoped memory for tpu_custom_call.1']
    %7 = vsyncpa [#allocation3], 0
    %8 = vsyncpa [#allocation5], 0
    // Predicated region
    $region2: #{tpu_custom_call.1} parent=1 // pred_check
      _
    $region3: #{tpu_custom_call.1} parent=1 // pred_check_branch
      %10 = sbr.rel (0) target = $region5
    $region4: #{tpu_custom_call.1} parent=1 // pred_region
      %s12 = ssub.s32 256, 256
      %13 = vsyncadd [#allocation3], %s12
      %s14 = sshll.u32 [#allocation2], 4
      %s15 = int_to_ptr.vmem [resolvable:$true] %s14
      %20 = dma.hbm_to_vmem [thread:$0]  %s0, 256, %s15, [#allocation3], 128, 128, 8
    $region5: #{tpu_custom_call.1} parent=1 // pred_fallthru
      _
    // Predicated region
    $region6: #{tpu_custom_call.1} parent=1 // pred_check
      _
    $region7: #{tpu_custom_call.1} parent=1 // pred_check_branch
      %22 = sbr.rel (0) target = $region9
    $region8: #{tpu_custom_call.1} parent=1 // pred_region
      %s24 = ssub.s32 256, 256
      %25 = vsyncadd [#allocation5], %s24
      %s26 = sshll.u32 [#allocation4], 4
      %s27 = int_to_ptr.vmem [resolvable:$true] %s26
      %32 = dma.hbm_to_vmem [thread:$0]  %s1, 256, %s27, [#allocation5], 128, 128, 8
    $region9: #{tpu_custom_call.1} parent=1 // pred_fallthru
      _
    // Predicated region
    $region10: #{tpu_custom_call.1} parent=1 // pred_check
      _
    $region11: #{tpu_custom_call.1} parent=1 // pred_check_branch
      %34 = sbr.rel (0) target = $region13
    $region12: #{tpu_custom_call.1} parent=1 // pred_region
      %35 = dma.done [#allocation3], 256
    $region13: #{tpu_custom_call.1} parent=1 // pred_fallthru
      _
    // Predicated region
    $region14: #{tpu_custom_call.1} parent=1 // pred_check
      _
    $region15: #{tpu_custom_call.1} parent=1 // pred_check_branch
      %37 = sbr.rel (0) target = $region17
    $region16: #{tpu_custom_call.1} parent=1 // pred_region
      %38 = dma.done [#allocation5], 256
    $region17: #{tpu_custom_call.1} parent=1 // pred_fallthru
      _
    %v39 = vld [vmem:[#allocation2] sm:$0xff]
    %v40 = vld [vmem:[#allocation2 + $0x8] sm:$0xff]
    %v41 = vld [vmem:[#allocation4] sm:$0xff]
    %v42 = vld [vmem:[#allocation4 + $0x8] sm:$0xff]
    %v43 = vmul.f32 %v39, 0.5
    %v44 = vmul.f32 %v40, 0.5
    %v45 = vtanh.pop %v43
    %v46 = vtanh.pop %v44
    %v47 = vadd.f32 %v45, 1.0
    %v48 = vadd.f32 %v46, 1.0
    %v49 = vmul.f32 %v47, 0.5
    %v50 = vmul.f32 %v48, 0.5
    %v51 = vmul.f32 %v49, %v41
    %v52 = vmul.f32 %v50, %v42
    %v53 = vadd.f32 %v51, %v52
    %v54 = vrot.slane %v53, 4
    %v55 = vadd.f32 %v53, %v54
    %v56 = vrot.slane %v55, 2
    %v57 = vadd.f32 %v55, %v56
    %v58 = vrot.slane %v57, 1
    %v59 = vadd.f32 %v57, %v58
    %60 = vst [vmem:[%s2] sm:$0x1] %v59
    %v61 = vadd.f32 %v49, %v50
    %v62 = vrot.slane %v61, 4
    %v63 = vadd.f32 %v61, %v62
    %v64 = vrot.slane %v63, 2
    %v65 = vadd.f32 %v63, %v64
    %v66 = vrot.slane %v65, 1
    %v67 = vadd.f32 %v65, %v66
    %68 = vst [vmem:[%s2 + $0x1] sm:$0x1] %v67
    %v69 = vadd.f32 %v41, %v42
    %v70 = vrot.slane %v69, 4
    %v71 = vadd.f32 %v69, %v70
    %v72 = vrot.slane %v71, 2
    %v73 = vadd.f32 %v71, %v72
    %v74 = vrot.slane %v73, 1
    %v75 = vadd.f32 %v73, %v74
    %76 = vst [vmem:[%s2 + $0x2] sm:$0x1] %v75
    // Predicated region
    $region18: #{tpu_custom_call.1} parent=1 // pred_check
      _
    $region19: #{tpu_custom_call.1} parent=1 // pred_check_branch
      %78 = sbr.rel (0) target = $region21
    $region20: #{tpu_custom_call.1} parent=1 // pred_region
      _
    $region21: #{tpu_custom_call.1} parent=1 // pred_fallthru
      _
    // Predicated region
    $region22: #{tpu_custom_call.1} parent=1 // pred_check
      _
    $region23: #{tpu_custom_call.1} parent=1 // pred_check_branch
      %80 = sbr.rel (0) target = $region25
    $region24: #{tpu_custom_call.1} parent=1 // pred_region
      _
    $region25: #{tpu_custom_call.1} parent=1 // pred_fallthru
      _
    %81 = vsyncpa [#allocation3], 1
    %82 = vsyncpa [#allocation5], 1

</llo_original>
